<compile_context>
chip_gen: v7x
topology: tpu7x:2x2x1
jax: 0.10.0
libtpu: 0.0.40
codegen_flags: <defaults>
</compile_context>

<pallas_src>
import functools

import jax
import jax.numpy as jnp
from jax.experimental import pallas as pl
from jax.experimental.pallas import tpu as pltpu


_ACTS = {
    "tanh": jnp.tanh,
    "sigmoid": jax.nn.sigmoid,
    "relu": jax.nn.relu,
    "abs": jnp.abs,
}


def rs_dim(Rs):
    return sum(mul * (2 * l + 1) for mul, l, _p in Rs)


def rs_mul(Rs):
    return sum(mul for mul, _l, _p in Rs)


def gate_expand_matrix(Rs_nonscalars, dtype=jnp.float32):
    """[n_gates, dim_nonscalars] 0/1 matrix: gate i broadcasts over the (2l+1)
    components of nonscalar irrep i (irreps ordered as in Rs)."""
    n_gates = rs_mul(Rs_nonscalars)
    dim_ns = rs_dim(Rs_nonscalars)
    rows, cols = [], []
    gate_idx, col = 0, 0
    for mul, l, _p in Rs_nonscalars:
        d = 2 * l + 1
        for _ in range(mul):
            for _m in range(d):
                rows.append(gate_idx)
                cols.append(col)
                col += 1
            gate_idx += 1
    mat = jnp.zeros((n_gates, dim_ns), dtype=dtype)
    mat = mat.at[jnp.array(rows), jnp.array(cols)].set(1.0)
    return mat


def _gated_kernel(x_ref, expand_ref, out_ref, *, act_scalars, act_gates, Ds, Dg, Dn):
    # One dense [tn, D_in] tile; static lane slices are free.
    x = x_ref[...].astype(jnp.float32)            # elementwise math in f32 (v5e-safe)

    if act_scalars == "tanh" and act_gates == "sigmoid":
        # Fused single-EUP pass: sigmoid(g) = 0.5*(tanh(0.5*g) + 1), so one
        # tanh over the combined scalars+gates lanes replaces tanh + sigmoid.
        sg = x[:, :Ds + Dg]                       # [tn, Ds+Dg]
        lane = jax.lax.broadcasted_iota(jnp.int32, (1, Ds + Dg), 1)
        is_gate = lane >= Ds
        pre = jnp.where(is_gate, 0.5, 1.0)        # pre-scale gate lanes by 0.5
        t = jnp.tanh(sg * pre)
        sg_act = t * pre + jnp.where(is_gate, 0.5, 0.0)
        s_act = sg_act[:, :Ds]                    # tanh(scalars)
        g_act = sg_act[:, Ds:]                    # sigmoid(gates)
    else:
        s_act = _ACTS[act_scalars](x[:, :Ds])
        g_act = _ACTS[act_gates](x[:, Ds:Ds + Dg])

    ns = x[:, Ds + Dg:]                           # [tn, Dn] nonscalar irreps

    # Broadcast each gate across the (2l+1) components of its nonscalar irrep
    # via a tiny MXU matmul against the 0/1 expansion matrix.  expand_ref's
    # index_map is constant, so its DMA happens only once across the grid.
    g_b = jnp.dot(g_act, expand_ref[...], preferred_element_type=jnp.float32)
    gated = ns * g_b                              # ElementwiseTensorProduct (l x 0 -> l)

    # concat([scalars, nonscalars], dim=-1): one full-tile store.
    out_ref[...] = jnp.concatenate([s_act, gated], axis=-1).astype(out_ref.dtype)


def _sublane_multiple(dtype):
    # f32 -> 8, bf16 -> 16, int8/fp8 -> 32 (packed sublane granularity).
    return max(8, 32 // jnp.dtype(dtype).itemsize)


def _round_up(v, m):
    return ((v + m - 1) // m) * m


class GatedBlockParity:
    """JAX/Pallas port of e3nn's GatedBlockParity (forward only).

    Note: the PyTorch module allows a distinct activation per irrep group in
    Rs_scalars / Rs_gates; here a single activation name is used for all
    scalar groups and one for all gate groups (exact for the configs below)."""

    def __init__(self, Rs_scalars, act_scalars, Rs_gates, act_gates, Rs_nonscalars,
                 *, block_rows=8192):
        assert all(l == 0 for _m, l, _p in Rs_scalars)
        assert all(l == 0 for _m, l, _p in Rs_gates)
        assert rs_mul(Rs_gates) == rs_mul(Rs_nonscalars)
        self.Rs_scalars, self.Rs_gates, self.Rs_nonscalars = (
            Rs_scalars, Rs_gates, Rs_nonscalars)
        self.act_scalars_name = act_scalars
        self.act_gates_name = act_gates
        self.dim_scalars = rs_dim(Rs_scalars)
        self.dim_gates = rs_dim(Rs_gates)
        self.dim_nonscalars = rs_dim(Rs_nonscalars)
        self.dim_in = self.dim_scalars + self.dim_gates + self.dim_nonscalars
        self.dim_out = self.dim_scalars + self.dim_nonscalars
        self.block_rows = block_rows
        # Gate-expansion matrix built once at module construction.
        self.expand = gate_expand_matrix(Rs_nonscalars, jnp.float32)

    def __call__(self, features):
        *lead, D = features.shape
        assert D == self.dim_in
        n = 1
        for d in lead:
            n *= d
        Ds, Dg, Dn = self.dim_scalars, self.dim_gates, self.dim_nonscalars

        if Dg == 0:
            # "else: features = scalars" branch of the PyTorch forward.
            # TODO(synk): trivial gate-free path not routed through the Pallas kernel.
            return _ACTS[self.act_scalars_name](features[..., :Ds])

        x = features.reshape(n, D)

        # Row tiling:
        #  * large blocks amortize the ~0.35us fixed per-grid-step overhead
        #  * keep the "parallel" grid >= 2 steps when possible (v7x megacore)
        #  * never allocate more rows than the input has (tiny-n case)
        #  * sublane alignment is dtype-aware (8/16/32 for 4/2/1-byte dtypes)
        # Ragged tails are handled by Pallas partial-block semantics (OOB reads
        # padded/garbage, OOB writes masked); all math here is row-wise.
        sub = _sublane_multiple(features.dtype)
        block_rows = self.block_rows
        if n > 2 * sub:
            block_rows = min(block_rows, _round_up(pl.cdiv(n, 2), sub))
        block_rows = max(sub, min(block_rows, _round_up(n, sub)))
        grid = (pl.cdiv(n, block_rows),)

        kernel = functools.partial(
            _gated_kernel,
            act_scalars=self.act_scalars_name,
            act_gates=self.act_gates_name,
            Ds=Ds, Dg=Dg, Dn=Dn,
        )

        itemsize = jnp.dtype(features.dtype).itemsize
        cost = pl.CostEstimate(
            flops=2 * n * Dg * Dn,
            transcendentals=n * (Ds + Dg),
            bytes_accessed=n * (self.dim_in + self.dim_out) * itemsize + Dg * Dn * 4,
        )

        out = pl.pallas_call(
            kernel,
            out_shape=jax.ShapeDtypeStruct((n, Ds + Dn), features.dtype),
            grid=grid,
            in_specs=[
                pl.BlockSpec((block_rows, D), lambda i: (i, 0)),
                # Constant block index => the small expansion matrix is DMA'd
                # once and stays resident across all grid steps.
                pl.BlockSpec((Dg, Dn), lambda i: (0, 0)),
            ],
            out_specs=pl.BlockSpec((block_rows, Ds + Dn), lambda i: (i, 0)),
            compiler_params=pltpu.CompilerParams(
                dimension_semantics=("parallel",)),
            cost_estimate=cost,
        )(x, self.expand)

        return out.reshape(*lead, Ds + Dn)


if __name__ == "__main__":
    # Synthetic irrep config:
    #   scalars:    8 x l=0  (tanh)
    #   gates:      8 x l=0  (sigmoid)
    #   nonscalars: 4 x l=1 + 4 x l=2  -> 4*3 + 4*5 = 32 dims, 8 irreps == 8 gates
    Rs_scalars = [(8, 0, 1)]
    Rs_gates = [(8, 0, 1)]
    Rs_nonscalars = [(4, 1, 1), (4, 2, 1)]

    module = GatedBlockParity(Rs_scalars, "tanh", Rs_gates, "sigmoid", Rs_nonscalars)

    Ds, Dg = module.dim_scalars, module.dim_gates
    expand_ref = gate_expand_matrix(Rs_nonscalars)

    def reference(x):
        s_ref = jnp.tanh(x[..., :Ds])
        g_ref = jax.nn.sigmoid(x[..., Ds:Ds + Dg])
        ns_ref = x[..., Ds + Dg:]
        g_b = jnp.einsum("...g,gd->...d", g_ref, expand_ref)
        return jnp.concatenate([s_ref, ns_ref * g_b], axis=-1)

    key = jax.random.PRNGKey(0)
    k1, k2, k3 = jax.random.split(key, 3)

    # Small shape (2 parallel grid steps of 16 rows each).
    B, A = 2, 16
    x_small = jax.random.normal(k1, (B, A, module.dim_in), dtype=jnp.float32)  # [2,16,48]
    y_small = jax.block_until_ready(module(x_small))
    assert y_small.shape == (B, A, module.dim_out)
    assert jnp.allclose(y_small, reference(x_small), atol=1e-5, rtol=1e-5)

    # Larger shape exercising the dual-TC-aware block split
    # (n=2400 -> block_rows=1200, 2 parallel grid steps, no padding copies).
    N2 = 2400
    x_big = jax.random.normal(k2, (N2, module.dim_in), dtype=jnp.float32)
    y_big = jax.block_until_ready(module(x_big))
    assert y_big.shape == (N2, module.dim_out)
    assert jnp.allclose(y_big, reference(x_big), atol=1e-5, rtol=1e-5)

    # Ragged tail exercising Pallas partial-block handling (no wrapper pad/slice):
    # n=1234, block_rows=512 -> 3 grid steps, last block has 210 valid rows.
    module_ragged = GatedBlockParity(Rs_scalars, "tanh", Rs_gates, "sigmoid",
                                     Rs_nonscalars, block_rows=512)
    N3 = 1234
    x_rag = jax.random.normal(k3, (N3, module.dim_in), dtype=jnp.float32)
    y_rag = jax.block_until_ready(module_ragged(x_rag))
    assert y_rag.shape == (N3, module.dim_out)
    assert jnp.allclose(y_rag, reference(x_rag), atol=1e-5, rtol=1e-5)

    print("KERNEL_OK")
</pallas_src>

<mosaic_0001>
module attributes {stable_mosaic.version = 11 : i64} {
  func.func @_gated_kernel(%arg0: i32, %arg1: memref<16x48xf32, #tpu.memory_space<vmem>>, %arg2: memref<8x32xf32, #tpu.memory_space<vmem>>, %arg3: memref<16x40xf32, #tpu.memory_space<vmem>>) attributes {dimension_semantics = [#tpu.dimension_semantics<parallel>], iteration_bounds = array<i64: 2>, scalar_prefetch = 0 : i64, scratch_operands = 0 : i64, tpu.core_type = #tpu.core_type<tc>, window_params = [{transform_indices = @transform_0, window_bounds = array<i64: 16, 48>}, {pipeline_mode = #tpu.pipeline_mode<synchronous>, transform_indices = @transform_1, window_bounds = array<i64: 8, 32>}, {transform_indices = @transform_2, window_bounds = array<i64: 16, 40>}]} {
    %c0 = arith.constant 0 : index
    %c0_0 = arith.constant 0 : index
    %0 = vector.load %arg1[%c0, %c0_0] : memref<16x48xf32, #tpu.memory_space<vmem>>, vector<16x48xf32>
    %1 = vector.extract_strided_slice %0 {offsets = [0, 0], sizes = [16, 16], strides = [1, 1]} : vector<16x48xf32> to vector<16x16xf32>
    %2 = tpu.iota {dimensions = array<i32: 1>} : vector<1x16xi32>
    %c8_i32 = arith.constant 8 : i32
    %3 = vector.broadcast %c8_i32 : i32 to vector<1x16xi32>
    %4 = arith.cmpi sge, %2, %3 : vector<1x16xi32>
    %cst = arith.constant 5.000000e-01 : f32
    %cst_1 = arith.constant 1.000000e+00 : f32
    %5 = vector.broadcast %cst : f32 to vector<1x16xf32>
    %6 = vector.broadcast %cst_1 : f32 to vector<1x16xf32>
    %7 = arith.select %4, %5, %6 : vector<1x16xi1>, vector<1x16xf32>
    %8 = vector.broadcast %7 : vector<1x16xf32> to vector<16x16xf32>
    %9 = arith.mulf %1, %8 : vector<16x16xf32>
    %10 = math.tanh %9 : vector<16x16xf32>
    %11 = vector.broadcast %7 : vector<1x16xf32> to vector<16x16xf32>
    %12 = arith.mulf %10, %11 : vector<16x16xf32>
    %cst_2 = arith.constant 5.000000e-01 : f32
    %cst_3 = arith.constant 0.000000e+00 : f32
    %13 = vector.broadcast %cst_2 : f32 to vector<1x16xf32>
    %14 = vector.broadcast %cst_3 : f32 to vector<1x16xf32>
    %15 = arith.select %4, %13, %14 : vector<1x16xi1>, vector<1x16xf32>
    %16 = vector.broadcast %15 : vector<1x16xf32> to vector<16x16xf32>
    %17 = arith.addf %12, %16 : vector<16x16xf32>
    %18 = vector.extract_strided_slice %17 {offsets = [0, 0], sizes = [16, 8], strides = [1, 1]} : vector<16x16xf32> to vector<16x8xf32>
    %19 = vector.extract_strided_slice %17 {offsets = [0, 8], sizes = [16, 8], strides = [1, 1]} : vector<16x16xf32> to vector<16x8xf32>
    %20 = vector.extract_strided_slice %0 {offsets = [0, 16], sizes = [16, 32], strides = [1, 1]} : vector<16x48xf32> to vector<16x32xf32>
    %c0_4 = arith.constant 0 : index
    %c0_5 = arith.constant 0 : index
    %21 = vector.load %arg2[%c0_4, %c0_5] : memref<8x32xf32, #tpu.memory_space<vmem>>, vector<8x32xf32>
    %cst_6 = arith.constant dense<0.000000e+00> : vector<16x32xf32>
    %22 = tpu.matmul %19, %21, %cst_6 {dimension_numbers = #tpu.dot_dimension_numbers<[1], [0], [0], [1], [0, 0, 1, 1], [], []>} : vector<16x8xf32>, vector<8x32xf32>, vector<16x32xf32> -> vector<16x32xf32>
    %23 = arith.mulf %20, %22 : vector<16x32xf32>
    %24 = tpu.concatenate %18, %23 in 1 : vector<16x8xf32>, vector<16x32xf32> -> vector<16x40xf32>
    %c0_7 = arith.constant 0 : index
    %c0_8 = arith.constant 0 : index
    %25 = vector.load %arg3[%c0_7, %c0_8] : memref<16x40xf32, #tpu.memory_space<vmem>>, vector<16x40xf32>
    tpu.vector_store %arg3[%c0_7, %c0_8], %24 {strides = array<i32>} : memref<16x40xf32, #tpu.memory_space<vmem>>, vector<16x40xf32>,
    return
  }
  func.func @transform_0(%arg0: i32) -> (i32, i32) {
    %c0_i32 = arith.constant 0 : i32
    %c0_i32_0 = arith.constant 0 : i32
    return %arg0, %c0_i32 : i32, i32
  }
  func.func @transform_1(%arg0: i32) -> (i32, i32) {
    %c0_i32 = arith.constant 0 : i32
    %c0_i32_0 = arith.constant 0 : i32
    %c0_i32_1 = arith.constant 0 : i32
    return %c0_i32, %c0_i32_0 : i32, i32
  }
  func.func @transform_2(%arg0: i32) -> (i32, i32) {
    %c0_i32 = arith.constant 0 : i32
    %c0_i32_0 = arith.constant 0 : i32
    return %arg0, %c0_i32 : i32, i32
  }
}

</mosaic_0001>

<llo_original>
// kernel: tpu_custom_call.1
$region0: #{tpu_custom_call.1}
  #allocation0 [shape = 'u32[]', space=smem, size = 0x4, offset = 0x4, fixed_abs, tag = 'smem constant byte address 0x4 - core index']
  #allocation1 [shape = 'u32[144,128]{1,0:T(1,128)}', space=vmem, size = 0x12000, scoped, tag = 'internal scratch']
  %s0 = inlined_call_operand.hbm [shape: f32[32,48], index: 0, kind: input, shape index: {}]
  %s1 = inlined_call_operand.hbm [shape: f32[8,32], index: 1, kind: input, shape index: {}]
  %s2 = inlined_call_operand.hbm [shape: f32[32,40], index: 2, kind: output, shape index: {}]
  %s3 = sld [smem:[#allocation0]]
  $region49: #{tpu_custom_call.1} parent=0
    _
  %s5 = ssub.s32 1, %s3
  %s6 = scalar_select 0, %s5, %s3
  $region1: #{tpu_custom_call.1} parent=0
    #allocation2 [shape = 'u8[16384]{0}', space=vmem, size = 0x4000, scoped, tag = 'input window, operand 0']
    #allocation3 [shape = 's32[2]{0}', space=sflag, size = 0x8, scoped, tag = 'scoped memory for tpu_custom_call.1']
    #allocation4 [shape = 's32[2]{0}', space=sflag, size = 0x8, scoped, tag = 'scoped memory for tpu_custom_call.1']
    #allocation5 [shape = 'u8[4096]{0}', space=vmem, size = 0x1000, scoped, tag = 'input window, operand 1, single buffered']
    #allocation6 [shape = 's32[1]{0}', space=sflag, size = 0x4, scoped, tag = 'scoped memory for tpu_custom_call.1']
    #allocation7 [shape = 'u8[16384]{0}', space=vmem, size = 0x4000, scoped, tag = 'output window, operand 0']
    %7 = vsyncpa [#allocation3], 0
    %s8 = scalar_lea.sflag [#allocation3], 1
    %9 = vsyncpa %s8, 0
    %10 = vsyncpa [#allocation6], 0
    %11 = vsyncpa [#allocation4], 0
    %s12 = scalar_lea.sflag [#allocation4], 1
    %13 = vsyncpa %s12, 0
    loop: start=0, step=1, limit=4
    $region2: #{tpu_custom_call.1} parent=1 // loop_pre_header
      _
    $region3: #{tpu_custom_call.1} parent=1 // loop_header
      %s15 = sphi 0, %s19
      %p16 = scmp.ge.s32.totalorder %s15, 4
      %s25 = sphi 0, %s27
      %s28 = sphi 0, %s25
      %s29 = sphi 0, %s28
      %s45 = sphi 0, %s29
      %s49 = sphi 0, %s49
      %s51 = sphi 0, %s49
      %s52 = sphi 0, %s51
      %s66 = sphi 0, %s52
      %s72 = sphi 0, %s74
      %s75 = sphi 0, %s72
      %s76 = sphi 0, %s75
      %s92 = sphi 0, %s76
    $region4: #{tpu_custom_call.1} parent=1 // loop_header_branch
      %18 = sbr.rel (%p16) target = $region8
    $region5: #{tpu_custom_call.1} parent=1 // loop_body
      %s20 = ssub.s32 %s15, 1
      %s21 = ssub.s32 %s15, 2
      %s22 = sadd.s32 %s15, 1
      %s23 = ssub.s32 %s15, %s22
      %p24 = scmp.eq.s32.totalorder %s23, 0
      %s26 = sadd.s32 %s25, 1
      %s27 = scalar_select %p24, %s25, %s26
      %p30 = pneg %p24
      %p31 = scmp.eq.s32.totalorder %s15, 1
      %p32 = por %p30, %p31
      %p33 = scmp.ne.s32.totalorder %s25, %s28
      %p34 = scmp.eq.s32.totalorder %s15, 0
      %p35 = por %p33, %p34
      %p36 = scmp.ne.s32.totalorder %s25, %s28
      %p37 = scmp.eq.s32.totalorder %s20, 1
      %p38 = por %p36, %p37
      %p39 = scmp.ne.s32.totalorder %s28, %s29
      %p40 = scmp.eq.s32.totalorder %s20, 0
      %p41 = por %p39, %p40
      %p42 = scmp.ne.s32.totalorder %s28, %s29
      %p43 = scmp.eq.s32.totalorder %s21, 1
      %p44 = por %p42, %p43
      %p46 = scmp.ne.s32.totalorder %s29, %s45
      %p47 = scmp.eq.s32.totalorder %s21, 0
      %p48 = por %p46, %p47
      %s50 = sadd.s32 %s49, 1
      %p53 = scmp.eq.s32.totalorder %s15, 1
      %p54 = scmp.ne.s32.totalorder %s49, %s51
      %p55 = scmp.eq.s32.totalorder %s15, 0
      %p56 = por %p54, %p55
      %p57 = scmp.ne.s32.totalorder %s49, %s51
      %p58 = scmp.eq.s32.totalorder %s20, 1
      %p59 = por %p57, %p58
      %p60 = scmp.ne.s32.totalorder %s51, %s52
      %p61 = scmp.eq.s32.totalorder %s20, 0
      %p62 = por %p60, %p61
      %p63 = scmp.ne.s32.totalorder %s51, %s52
      %p64 = scmp.eq.s32.totalorder %s21, 1
      %p65 = por %p63, %p64
      %p67 = scmp.ne.s32.totalorder %s52, %s66
      %p68 = scmp.eq.s32.totalorder %s21, 0
      %p69 = por %p67, %p68
      %s70 = ssub.s32 %s15, %s22
      %p71 = scmp.eq.s32.totalorder %s70, 0
      %s73 = sadd.s32 %s72, 1
      %s74 = scalar_select %p71, %s72, %s73
      %p77 = pneg %p71
      %p78 = scmp.eq.s32.totalorder %s15, 1
      %p79 = por %p77, %p78
      %p80 = scmp.ne.s32.totalorder %s72, %s75
      %p81 = scmp.eq.s32.totalorder %s15, 0
      %p82 = por %p80, %p81
      %p83 = scmp.ne.s32.totalorder %s72, %s75
      %p84 = scmp.eq.s32.totalorder %s20, 1
      %p85 = por %p83, %p84
      %p86 = scmp.ne.s32.totalorder %s75, %s76
      %p87 = scmp.eq.s32.totalorder %s20, 0
      %p88 = por %p86, %p87
      %p89 = scmp.ne.s32.totalorder %s75, %s76
      %p90 = scmp.eq.s32.totalorder %s21, 1
      %p91 = por %p89, %p90
      %p93 = scmp.ne.s32.totalorder %s76, %s92
      %p94 = scmp.eq.s32.totalorder %s21, 0
      %p95 = por %p93, %p94
      %p96 = scmp.le.s32.totalorder 1, %s15
      %p97 = scmp.lt.s32.totalorder %s15, 3
      %p98 = pnand %p96, %p97
      %p99 = pneg %p98
      // Predicated region
      $region9: #{tpu_custom_call.1} parent=5 // pred_check
        _
      $region10: #{tpu_custom_call.1} parent=5 // pred_check_branch
        %101 = sbr.rel (%p98) target = $region12
      $region11: #{tpu_custom_call.1} parent=5 // pred_region
        %s102 = ssub.s32 %s15, 1
        // Predicated region
        $region13: #{tpu_custom_call.1} parent=11 // pred_check
          %p103 = pneg %p62
        $region14: #{tpu_custom_call.1} parent=11 // pred_check_branch
          %105 = sbr.rel (%p103) target = $region16
        $region15: #{tpu_custom_call.1} parent=11 // pred_region
          %s107 = ssub.s32 128, 128
          %108 = vsyncadd [#allocation6], %s107
          %s110 = sshll.u32 [#allocation5], 4
          %s111 = int_to_ptr.vmem [resolvable:$true] %s110
          %113 = dma.hbm_to_vmem [thread:$0]  %s1, 128, %s111, [#allocation6]
        $region16: #{tpu_custom_call.1} parent=11 // pred_fallthru
          _
      $region12: #{tpu_custom_call.1} parent=5 // pred_fallthru
        _
      %p114 = scmp.lt.s32.totalorder %s15, 2
      // Predicated region
      $region17: #{tpu_custom_call.1} parent=5 // pred_check
        %p115 = pneg %p114
      $region18: #{tpu_custom_call.1} parent=5 // pred_check_branch
        %117 = sbr.rel (%p115) target = $region20
      $region19: #{tpu_custom_call.1} parent=5 // pred_region
        // Predicated region
        $region21: #{tpu_custom_call.1} parent=19 // pred_check
          %p118 = pneg %p35
        $region22: #{tpu_custom_call.1} parent=19 // pred_check_branch
          %120 = sbr.rel (%p118) target = $region24
        $region23: #{tpu_custom_call.1} parent=19 // pred_region
          %s121 = sand.u32 %s25, 1
          %s122 = scalar_lea.sflag [#allocation3], %s121
          %s123 = sand.u32 %s25, 1
          %s124 = smul.addr %s123, 16
          %s125 = scalar_lea.vmem [#allocation2], %s124
          %s126 = smul.u32 2, %s15
          %s128 = ssub.s32 256, 256
          %129 = vsyncadd %s122, %s128
          %s130 = smul.addr %s126, 128
          %s131 = scalar_lea.hbm %s0, %s130
          %s132 = sshll.u32 %s125, 4
          %s133 = int_to_ptr.vmem [resolvable:$true] %s132
          %138 = dma.hbm_to_vmem [thread:$0]  %s131, 256, %s133, %s122, 128, 128, 8
        $region24: #{tpu_custom_call.1} parent=19 // pred_fallthru
          _
      $region20: #{tpu_custom_call.1} parent=5 // pred_fallthru
        _
      %p139 = scmp.le.s32.totalorder 1, %s15
      %p140 = scmp.lt.s32.totalorder %s15, 3
      %p141 = pnand %p139, %p140
      %p142 = pneg %p141
      // Predicated region
      $region25: #{tpu_custom_call.1} parent=5 // pred_check
        _
      $region26: #{tpu_custom_call.1} parent=5 // pred_check_branch
        %144 = sbr.rel (%p141) target = $region28
      $region27: #{tpu_custom_call.1} parent=5 // pred_region
        %s145 = ssub.s32 %s15, 1
        %s146 = sand.u32 %s28, 1
        %s147 = scalar_lea.sflag [#allocation3], %s146
        %s148 = sand.u32 %s28, 1
        %s149 = smul.addr %s148, 16
        %s150 = scalar_lea.vmem [#allocation2], %s149
        // Predicated region
        $region29: #{tpu_custom_call.1} parent=27 // pred_check
          %p151 = pneg %p41
        $region30: #{tpu_custom_call.1} parent=27 // pred_check_branch
          %153 = sbr.rel (%p151) target = $region32
        $region31: #{tpu_custom_call.1} parent=27 // pred_region
          %154 = dma.done %s147, 256
        $region32: #{tpu_custom_call.1} parent=27 // pred_fallthru
          _
        // Predicated region
        $region33: #{tpu_custom_call.1} parent=27 // pred_check
          %p155 = pneg %p62
        $region34: #{tpu_custom_call.1} parent=27 // pred_check_branch
          %157 = sbr.rel (%p155) target = $region36
        $region35: #{tpu_custom_call.1} parent=27 // pred_region
          %158 = dma.done [#allocation6], 128
        $region36: #{tpu_custom_call.1} parent=27 // pred_fallthru
          _
        %s159 = sand.u32 %s28, 1
        %s160 = scalar_lea.sflag [#allocation3], %s159
        %s161 = sand.u32 %s28, 1
        %s162 = smul.addr %s161, 16
        %s163 = scalar_lea.vmem [#allocation2], %s162
        %p164 = pneg %p41
        %p165 = pneg %p38
        %p166 = pneg %p62
        %p167 = pneg %p59
        %p168 = pneg %p88
        %p169 = pneg %p85
        %s170 = sand.u32 %s75, 1
        %s171 = scalar_lea.sflag [#allocation4], %s170
        %s172 = sand.u32 %s75, 1
        %s173 = smul.addr %s172, 16
        %s174 = scalar_lea.vmem [#allocation7], %s173
        %s175 = smul.u32 2, %s20
        %s176 = smul.u32 2, %s20
        %v177 = vld [vmem:[%s150] sm:$0xff]
        %v178 = vld [vmem:[%s150 + $0x8] sm:$0xff]
        %v179 = vlaneseq
        %v180 = vand.u32 %v179, 127
        %vm181 = vcmp.ge.s32.totalorder %v180, 8
        %v182 = vsel %vm181, 0.5, 1.0
        %v183 = vmul.f32 %v177, %v182
        %v184 = vmul.f32 %v178, %v182
        %v185 = vtanh.pop %v183
        %v186 = vtanh.pop %v184
        %v187 = vmul.f32 %v185, %v182
        %v188 = vmul.f32 %v186, %v182
        %v189 = vsel %vm181, 0.5, 0.0
        %v190 = vadd.f32 %v187, %v189
        %v191 = vadd.f32 %v188, %v189
        %v192 = vld [vmem:[#allocation5] sm:$0xff]
        %195 = vrot.lane.b32.xlu0 %v190, 120
        %v196 = vpop.permute.xlu0 %195
        %197 = vrot.lane.b32.xlu0 %v191, 120
        %v198 = vpop.permute.xlu0 %197
        %vm199 = vcmask 64512
        %v200 = vsel %vm199, %v196, 0
        %v202 = vsel %vm199, %v198, 0
        %204 = vmatprep.subr.mxu0 0.0
        %205 = vmatpush1.msra.mxu0 %v192
        %206 = vmatprep.subr.mxu0 0.0
        %207 = vmatpush1.msra.mxu0 0.0
        %208 = vmatprep.subr.mxu0 0.0
        %209 = vmatpush1.msra.mxu0 0.0
        %210 = vmatprep.subr.mxu0 0.0
        %211 = vmatpush1.msra.mxu0 0.0
        %212 = vmatprep.subr.mxu0 0.0
        %213 = vmatpush1.msra.mxu0 0.0
        %214 = vmatprep.subr.mxu0 0.0
        %215 = vmatpush1.msra.mxu0 0.0
        %216 = vmatprep.subr.mxu0 0.0
        %217 = vmatpush1.msra.mxu0 0.0
        %218 = vmatprep.subr.mxu0 0.0
        %219 = vmatpush1.msra.mxu0 0.0
        %220 = vmatprep.subr.mxu0 0.0
        %221 = vmatpush1.msra.mxu0 0.0
        %222 = vmatprep.subr.mxu0 0.0
        %223 = vmatpush1.msra.mxu0 0.0
        %224 = vmatprep.subr.mxu0 0.0
        %225 = vmatpush1.msra.mxu0 0.0
        %226 = vmatprep.subr.mxu0 0.0
        %227 = vmatpush1.msra.mxu0 0.0
        %228 = vmatprep.subr.mxu0 0.0
        %229 = vmatpush1.msra.mxu0 0.0
        %230 = vmatprep.subr.mxu0 0.0
        %231 = vmatpush1.msra.mxu0 0.0
        %232 = vmatprep.subr.mxu0 0.0
        %233 = vmatpush1.msra.mxu0 0.0
        %234 = vmatprep.subr.mxu0 0.0
        %235 = vmatpush1.msra.mxu0 0.0
        %236 = vmatprep.subr.mxu0 0.0
        %237 = vmatpush1.msra.mxu0 0.0
        %238 = vmatprep.subr.mxu0 0.0
        %239 = vmatpush1.msra.mxu0 0.0
        %240 = vmatprep.subr.mxu0 0.0
        %241 = vmatpush1.msra.mxu0 0.0
        %242 = vmatprep.subr.mxu0 0.0
        %243 = vmatpush1.msra.mxu0 0.0
        %244 = vmatprep.subr.mxu0 0.0
        %245 = vmatpush1.msra.mxu0 0.0
        %246 = vmatprep.subr.mxu0 0.0
        %247 = vmatpush1.msra.mxu0 0.0
        %248 = vmatprep.subr.mxu0 0.0
        %249 = vmatpush1.msra.mxu0 0.0
        %250 = vmatprep.subr.mxu0 0.0
        %251 = vmatpush1.msra.mxu0 0.0
        %252 = vmatprep.subr.mxu0 0.0
        %253 = vmatpush1.msra.mxu0 0.0
        %254 = vmatprep.subr.mxu0 0.0
        %255 = vmatpush1.msra.mxu0 0.0
        %256 = vmatprep.subr.mxu0 0.0
        %257 = vmatpush1.msra.mxu0 0.0
        %258 = vmatprep.subr.mxu0 0.0
        %259 = vmatpush1.msra.mxu0 0.0
        %260 = vmatprep.subr.mxu0 0.0
        %261 = vmatpush1.msra.mxu0 0.0
        %262 = vmatprep.subr.mxu0 0.0
        %263 = vmatpush1.msra.mxu0 0.0
        %264 = vmatprep.subr.mxu0 0.0
        %265 = vmatpush1.msra.mxu0 0.0
        %266 = vmatprep.subr.mxu0 0.0
        %267 = vmatpush1.msra.mxu0 0.0
        %268 = vmatprep.mubr.f32.mxu0 0.0
        %269 = vmatmul.mubr.f32.gmra.mrb[0].mxu0 %v200
        %v270 = vpop.f32.mrb[0].mxu0
        %v271 = vadd.f32 0.0, %v270
        %v272 = vpop.f32.mrb[0].mxu0
        %273 = vmatprep.mubr.f32.mxu0 0.0
        %274 = vmatmul.mubr.f32.gmra.mrb[0].mxu0 %v202
        %v275 = vpop.f32.mrb[0].mxu0
        %v276 = vadd.f32 0.0, %v275
        %v277 = vpop.f32.mrb[0].mxu0
        %278 = vdwg.mxu0
        %281 = vrot.lane.b32.xlu0 %v271, 16
        %v282 = vpop.permute.xlu0 %281
        %283 = vrot.lane.b32.xlu0 %v276, 16
        %v284 = vpop.permute.xlu0 %283
        %v287 = vmul.f32 %v177, %v282
        %v288 = vmul.f32 %v178, %v284
        %291 = vrot.lane.b32.xlu0 %v287, 120
        %v292 = vpop.permute.xlu0 %291
        %293 = vrot.lane.b32.xlu0 %v288, 120
        %v294 = vpop.permute.xlu0 %293
        %v297 = vsel %vm199, %v190, %v292
        %v298 = vsel %vm199, %v191, %v294
        %vm299 = vcmask 326656
        %300 = vst.msk [vmem:[%s174] sm:$0xff] %vm299, %v297
        %301 = vst.msk [vmem:[%s174 + $0x8] sm:$0xff] %vm299, %v298
        %s302 = sand.u32 %s75, 1
        %s303 = scalar_lea.sflag [#allocation4], %s302
        %s304 = sand.u32 %s75, 1
        %s305 = smul.addr %s304, 16
        %s306 = scalar_lea.vmem [#allocation7], %s305
        // Predicated region
        $region37: #{tpu_custom_call.1} parent=27 // pred_check
          %p307 = pneg %p85
        $region38: #{tpu_custom_call.1} parent=27 // pred_check_branch
          %309 = sbr.rel (%p307) target = $region40
        $region39: #{tpu_custom_call.1} parent=27 // pred_region
          %s310 = smul.u32 2, %s20
          %s312 = ssub.s32 256, 256
          %313 = vsyncadd %s303, %s312
          %s314 = smul.addr %s310, 128
          %s315 = scalar_lea.hbm %s2, %s314
          %s316 = sshll.u32 %s306, 4
          %s317 = int_to_ptr.vmem [resolvable:$true] %s316
          %322 = dma.vmem_to_hbm [thread:$0]  %s317, 256, %s315, %s303, 128, 128, 8
        $region40: #{tpu_custom_call.1} parent=27 // pred_fallthru
          _
      $region28: #{tpu_custom_call.1} parent=5 // pred_fallthru
        _
      %p323 = scmp.le.s32.totalorder 2, %s15
      // Predicated region
      $region41: #{tpu_custom_call.1} parent=5 // pred_check
        %p324 = pneg %p323
      $region42: #{tpu_custom_call.1} parent=5 // pred_check_branch
        %326 = sbr.rel (%p324) target = $region44
      $region43: #{tpu_custom_call.1} parent=5 // pred_region
        %s327 = ssub.s32 %s15, 2
        // Predicated region
        $region45: #{tpu_custom_call.1} parent=43 // pred_check
          %p328 = pneg %p91
        $region46: #{tpu_custom_call.1} parent=43 // pred_check_branch
          %330 = sbr.rel (%p328) target = $region48
        $region47: #{tpu_custom_call.1} parent=43 // pred_region
          %s331 = sand.u32 %s76, 1
          %s332 = scalar_lea.sflag [#allocation4], %s331
          %s333 = sand.u32 %s76, 1
          %s334 = smul.addr %s333, 16
          %s335 = scalar_lea.vmem [#allocation7], %s334
          %336 = dma.done %s332, 256
        $region48: #{tpu_custom_call.1} parent=43 // pred_fallthru
          _
      $region44: #{tpu_custom_call.1} parent=5 // pred_fallthru
        _
    $region6: #{tpu_custom_call.1} parent=1 // loop_footer
      %s19 = sadd.s32 1, %s15
    $region7: #{tpu_custom_call.1} parent=1 // loop_footer_branch
      %14 = sbr.rel target = $region3
    $region8: #{tpu_custom_call.1} parent=1 // loop_exit
      _
    %337 = vsyncpa [#allocation3], 1
    %s338 = scalar_lea.sflag [#allocation3], 1
    %339 = vsyncpa %s338, 1
    %340 = vsyncpa [#allocation6], 1
    %341 = vsyncpa [#allocation4], 1
    %s342 = scalar_lea.sflag [#allocation4], 1
    %343 = vsyncpa %s342, 1

</llo_original>
